<compile_context>
chip_gen: v6e
topology: v6e:2x2x1
jax: 0.10.0
libtpu: 0.0.40
codegen_flags: <defaults>
</compile_context>

<pallas_src>
import functools

import jax
import jax.numpy as jnp
from jax.experimental import pallas as pl
from jax.experimental.pallas import tpu as pltpu


def _round_up(v, m):
    return (v + m - 1) // m * m


def classifier_kernel(x_ref, y_ref, w1a_ref, w1b_ref, b1_ref,
                      w2_ref, b2_ref, w3_ref, b3_ref, out_ref):
    # Layer 1: relu(concat(x, y) @ W1 + b1) == relu(x@W1a + y@W1b + b1).
    # bf16 operands, f32 accumulation on the MXU.
    h1 = jnp.dot(x_ref[...], w1a_ref[...], preferred_element_type=jnp.float32)
    h1 = h1 + jnp.dot(y_ref[...], w1b_ref[...],
                      preferred_element_type=jnp.float32)
    h1 = jnp.maximum(h1 + b1_ref[...], 0.0)            # f32 bias + ReLU

    # Layer 2: relu(h1 @ W2 + b2)
    h2 = jnp.dot(h1.astype(w2_ref.dtype), w2_ref[...],
                 preferred_element_type=jnp.float32)
    h2 = jnp.maximum(h2 + b2_ref[...], 0.0)

    # Layer 3: h2 @ W3_padded + b3_padded  (output lanes padded to 128-mult)
    out = jnp.dot(h2.astype(w3_ref.dtype), w3_ref[...],
                  preferred_element_type=jnp.float32)
    out_ref[...] = (out + b3_ref[...]).astype(out_ref.dtype)


@functools.partial(jax.jit, static_argnames=("block_b",))
def classifier_forward(x, y, params, *, block_b=None):
    """x: (B, E), y: (B, E) -> (B, num_classes)."""
    w1, b1, w2, b2, w3, b3 = params          # weights in (in, out) layout
    B, E = x.shape
    H = 2 * E
    C = w3.shape[1]
    C_pad = _round_up(C, 128)
    compute_dtype = jnp.bfloat16

    # --- one-time weight prep (outside the kernel, fused by XLA) ------------
    w1a = w1[:E, :].astype(compute_dtype)    # (E, H)
    w1b = w1[E:, :].astype(compute_dtype)    # (E, H)
    w2c = w2.astype(compute_dtype)           # (H, E)
    w3p = jnp.zeros((E, C_pad), compute_dtype).at[:, :C].set(
        w3.astype(compute_dtype))            # (E, C_pad), zero-padded lanes
    b1f = b1.astype(jnp.float32)
    b2f = b2.astype(jnp.float32)
    b3p = jnp.zeros((1, C_pad), jnp.float32).at[:, :C].set(
        b3.astype(jnp.float32))

    # --- batch tiling: never default to block_b == B ------------------------
    if block_b is None:
        block_b = min(_round_up(B, 8), 1024)
    block_b = max(8, _round_up(block_b, 8))
    B_pad = _round_up(B, block_b)
    if B_pad != B:
        pad = B_pad - B
        x = jnp.pad(x, ((0, pad), (0, 0)))
        y = jnp.pad(y, ((0, pad), (0, 0)))
    xb = x.astype(compute_dtype)
    yb = y.astype(compute_dtype)
    grid = (B_pad // block_b,)

    # --- VMEM budget: resident weights + double-buffered activation tiles ---
    weight_bytes = (2 * E * H + H * E + E * C_pad) * 2 + (H + E + C_pad) * 4
    act_bytes = 2 * (2 * block_b * E * 2) + 2 * (block_b * C_pad * 4)
    scratch_bytes = block_b * (H + E) * 4           # h1 / h2 intermediates
    vmem_limit = min(max(2 * (weight_bytes + act_bytes + scratch_bytes),
                         16 * 1024 * 1024),
                     48 * 1024 * 1024)               # safe on v7x (64 MiB)
    # TODO(synk): if E is large enough that weights alone exceed ~48 MiB,
    # add a K/N grid axis over W1 with a pl.when-initialized accumulator.

    flops = 2 * B_pad * (2 * E * H + H * E + E * C_pad)
    bytes_accessed = (2 * B_pad * E * 2            # x, y (bf16)
                      + weight_bytes               # weights + biases
                      + B_pad * C_pad * 4)         # output (f32)

    full = lambda shape: pl.BlockSpec(shape, lambda i: (0,) * len(shape))

    out = pl.pallas_call(
        classifier_kernel,
        out_shape=jax.ShapeDtypeStruct((B_pad, C_pad), jnp.float32),
        grid_spec=pltpu.PrefetchScalarGridSpec(
            num_scalar_prefetch=0,
            grid=grid,
            in_specs=[
                pl.BlockSpec((block_b, E), lambda i: (i, 0)),   # x tile
                pl.BlockSpec((block_b, E), lambda i: (i, 0)),   # y tile
                full((E, H)),        # W1a
                full((E, H)),        # W1b
                full((1, H)),        # b1
                full((H, E)),        # W2
                full((1, E)),        # b2
                full((E, C_pad)),    # W3 (lane-padded)
                full((1, C_pad)),    # b3 (lane-padded)
            ],
            out_specs=pl.BlockSpec((block_b, C_pad), lambda i: (i, 0)),
        ),
        compiler_params=pltpu.CompilerParams(
            dimension_semantics=("parallel",),
            vmem_limit_bytes=int(vmem_limit)),
        cost_estimate=pl.CostEstimate(flops=flops,
                                      transcendentals=0,
                                      bytes_accessed=bytes_accessed),
    )(xb, yb, w1a, w1b, b1f, w2c, b2f, w3p, b3p)

    return out[:B, :C]


def init_classifier_params(key, embed_size, num_classes):
    """Deterministic synthetic parameters (shapes match the nn.Linear stack)."""
    H = 2 * embed_size
    k1, k2, k3, k4, k5, k6 = jax.random.split(key, 6)
    # Stored as (in, out); PyTorch stores (out, in) and applies x @ W.T.
    w1 = jax.random.normal(k1, (H, H), jnp.float32) * 0.05
    b1 = jax.random.normal(k2, (1, H), jnp.float32) * 0.05
    w2 = jax.random.normal(k3, (H, embed_size), jnp.float32) * 0.05
    b2 = jax.random.normal(k4, (1, embed_size), jnp.float32) * 0.05
    w3 = jax.random.normal(k5, (embed_size, num_classes), jnp.float32) * 0.05
    b3 = jax.random.normal(k6, (1, num_classes), jnp.float32) * 0.05
    return (w1, b1, w2, b2, w3, b3)


def reference_forward(x, y, params):
    w1, b1, w2, b2, w3, b3 = params
    xy = jnp.concatenate([x, y], axis=-1)
    h1 = jnp.maximum(xy @ w1 + b1, 0.0)
    h2 = jnp.maximum(h1 @ w2 + b2, 0.0)
    return h2 @ w3 + b3


if __name__ == "__main__":
    embed_size = 32
    num_classes = 8
    batch = 8

    key = jax.random.PRNGKey(0)
    kx, ky, kp = jax.random.split(key, 3)
    x = jax.random.normal(kx, (batch, embed_size), jnp.float32)
    y = jax.random.normal(ky, (batch, embed_size), jnp.float32)
    params = init_classifier_params(kp, embed_size, num_classes)

    out = classifier_forward(x, y, params)
    out = jax.block_until_ready(out)

    ref = reference_forward(x, y, params)
    assert out.shape == (batch, num_classes)
    # bf16 matmul operands with f32 accumulation -> relaxed tolerance.
    assert jnp.allclose(out, ref, atol=3e-2, rtol=3e-2), (
        float(jnp.max(jnp.abs(out - ref))))

    print("KERNEL_OK")
</pallas_src>

<mosaic_0001>
module attributes {stable_mosaic.version = 11 : i64} {
  func.func @classifier_kernel(%arg0: i32, %arg1: memref<8x32xbf16, #tpu.memory_space<vmem>>, %arg2: memref<8x32xbf16, #tpu.memory_space<vmem>>, %arg3: memref<32x64xbf16, #tpu.memory_space<vmem>>, %arg4: memref<32x64xbf16, #tpu.memory_space<vmem>>, %arg5: memref<1x64xf32, #tpu.memory_space<vmem>>, %arg6: memref<64x32xbf16, #tpu.memory_space<vmem>>, %arg7: memref<1x32xf32, #tpu.memory_space<vmem>>, %arg8: memref<32x128xbf16, #tpu.memory_space<vmem>>, %arg9: memref<1x128xf32, #tpu.memory_space<vmem>>, %arg10: memref<8x128xf32, #tpu.memory_space<vmem>>) attributes {dimension_semantics = [#tpu.dimension_semantics<parallel>], iteration_bounds = array<i64: 1>, scalar_prefetch = 0 : i64, scratch_operands = 0 : i64, tpu.core_type = #tpu.core_type<tc>, window_params = [{transform_indices = @transform_0, window_bounds = array<i64: 8, 32>}, {transform_indices = @transform_1, window_bounds = array<i64: 8, 32>}, {pipeline_mode = #tpu.pipeline_mode<synchronous>, transform_indices = @transform_2, window_bounds = array<i64: 32, 64>}, {pipeline_mode = #tpu.pipeline_mode<synchronous>, transform_indices = @transform_3, window_bounds = array<i64: 32, 64>}, {pipeline_mode = #tpu.pipeline_mode<synchronous>, transform_indices = @transform_4, window_bounds = array<i64: 1, 64>}, {pipeline_mode = #tpu.pipeline_mode<synchronous>, transform_indices = @transform_5, window_bounds = array<i64: 64, 32>}, {pipeline_mode = #tpu.pipeline_mode<synchronous>, transform_indices = @transform_6, window_bounds = array<i64: 1, 32>}, {pipeline_mode = #tpu.pipeline_mode<synchronous>, transform_indices = @transform_7, window_bounds = array<i64: 32, 128>}, {pipeline_mode = #tpu.pipeline_mode<synchronous>, transform_indices = @transform_8, window_bounds = array<i64: 1, 128>}, {transform_indices = @transform_9, window_bounds = array<i64: 8, 128>}]} {
    %c0 = arith.constant 0 : index
    %c0_0 = arith.constant 0 : index
    %0 = vector.load %arg1[%c0, %c0_0] : memref<8x32xbf16, #tpu.memory_space<vmem>>, vector<8x32xbf16>
    %c0_1 = arith.constant 0 : index
    %c0_2 = arith.constant 0 : index
    %1 = vector.load %arg3[%c0_1, %c0_2] : memref<32x64xbf16, #tpu.memory_space<vmem>>, vector<32x64xbf16>
    %cst = arith.constant dense<0.000000e+00> : vector<8x64xf32>
    %2 = tpu.matmul %0, %1, %cst {dimension_numbers = #tpu.dot_dimension_numbers<[1], [0], [0], [1], [0, 0, 1, 1], [], []>} : vector<8x32xbf16>, vector<32x64xbf16>, vector<8x64xf32> -> vector<8x64xf32>
    %c0_3 = arith.constant 0 : index
    %c0_4 = arith.constant 0 : index
    %3 = vector.load %arg2[%c0_3, %c0_4] : memref<8x32xbf16, #tpu.memory_space<vmem>>, vector<8x32xbf16>
    %c0_5 = arith.constant 0 : index
    %c0_6 = arith.constant 0 : index
    %4 = vector.load %arg4[%c0_5, %c0_6] : memref<32x64xbf16, #tpu.memory_space<vmem>>, vector<32x64xbf16>
    %cst_7 = arith.constant dense<0.000000e+00> : vector<8x64xf32>
    %5 = tpu.matmul %3, %4, %cst_7 {dimension_numbers = #tpu.dot_dimension_numbers<[1], [0], [0], [1], [0, 0, 1, 1], [], []>} : vector<8x32xbf16>, vector<32x64xbf16>, vector<8x64xf32> -> vector<8x64xf32>
    %6 = arith.addf %2, %5 : vector<8x64xf32>
    %c0_8 = arith.constant 0 : index
    %c0_9 = arith.constant 0 : index
    %7 = vector.load %arg5[%c0_8, %c0_9] : memref<1x64xf32, #tpu.memory_space<vmem>>, vector<1x64xf32>
    %8 = vector.broadcast %7 : vector<1x64xf32> to vector<8x64xf32>
    %9 = arith.addf %6, %8 : vector<8x64xf32>
    %cst_10 = arith.constant 0.000000e+00 : f32
    %10 = vector.broadcast %cst_10 : f32 to vector<8x64xf32>
    %11 = arith.maximumf %9, %10 : vector<8x64xf32>
    %12 = arith.truncf %11 : vector<8x64xf32> to vector<8x64xbf16>
    %c0_11 = arith.constant 0 : index
    %c0_12 = arith.constant 0 : index
    %13 = vector.load %arg6[%c0_11, %c0_12] : memref<64x32xbf16, #tpu.memory_space<vmem>>, vector<64x32xbf16>
    %cst_13 = arith.constant dense<0.000000e+00> : vector<8x32xf32>
    %14 = tpu.matmul %12, %13, %cst_13 {dimension_numbers = #tpu.dot_dimension_numbers<[1], [0], [0], [1], [0, 0, 1, 1], [], []>} : vector<8x64xbf16>, vector<64x32xbf16>, vector<8x32xf32> -> vector<8x32xf32>
    %c0_14 = arith.constant 0 : index
    %c0_15 = arith.constant 0 : index
    %15 = vector.load %arg7[%c0_14, %c0_15] : memref<1x32xf32, #tpu.memory_space<vmem>>, vector<1x32xf32>
    %16 = vector.broadcast %15 : vector<1x32xf32> to vector<8x32xf32>
    %17 = arith.addf %14, %16 : vector<8x32xf32>
    %cst_16 = arith.constant 0.000000e+00 : f32
    %18 = vector.broadcast %cst_16 : f32 to vector<8x32xf32>
    %19 = arith.maximumf %17, %18 : vector<8x32xf32>
    %20 = arith.truncf %19 : vector<8x32xf32> to vector<8x32xbf16>
    %c0_17 = arith.constant 0 : index
    %c0_18 = arith.constant 0 : index
    %21 = vector.load %arg8[%c0_17, %c0_18] : memref<32x128xbf16, #tpu.memory_space<vmem>>, vector<32x128xbf16>
    %cst_19 = arith.constant dense<0.000000e+00> : vector<8x128xf32>
    %22 = tpu.matmul %20, %21, %cst_19 {dimension_numbers = #tpu.dot_dimension_numbers<[1], [0], [0], [1], [0, 0, 1, 1], [], []>} : vector<8x32xbf16>, vector<32x128xbf16>, vector<8x128xf32> -> vector<8x128xf32>
    %c0_20 = arith.constant 0 : index
    %c0_21 = arith.constant 0 : index
    %23 = vector.load %arg9[%c0_20, %c0_21] : memref<1x128xf32, #tpu.memory_space<vmem>>, vector<1x128xf32>
    %24 = vector.broadcast %23 : vector<1x128xf32> to vector<8x128xf32>
    %25 = arith.addf %22, %24 : vector<8x128xf32>
    %c0_22 = arith.constant 0 : index
    %c0_23 = arith.constant 0 : index
    %26 = vector.load %arg10[%c0_22, %c0_23] : memref<8x128xf32, #tpu.memory_space<vmem>>, vector<8x128xf32>
    tpu.vector_store %arg10[%c0_22, %c0_23], %25 {strides = array<i32>} : memref<8x128xf32, #tpu.memory_space<vmem>>, vector<8x128xf32>,
    return
  }
  func.func @transform_0(%arg0: i32) -> (i32, i32) {
    %c0_i32 = arith.constant 0 : i32
    %c0_i32_0 = arith.constant 0 : i32
    return %arg0, %c0_i32 : i32, i32
  }
  func.func @transform_1(%arg0: i32) -> (i32, i32) {
    %c0_i32 = arith.constant 0 : i32
    %c0_i32_0 = arith.constant 0 : i32
    return %arg0, %c0_i32 : i32, i32
  }
  func.func @transform_2(%arg0: i32) -> (i32, i32) {
    %c0_i32 = arith.constant 0 : i32
    %c0_i32_0 = arith.constant 0 : i32
    %c0_i32_1 = arith.constant 0 : i32
    return %c0_i32, %c0_i32_0 : i32, i32
  }
  func.func @transform_3(%arg0: i32) -> (i32, i32) {
    %c0_i32 = arith.constant 0 : i32
    %c0_i32_0 = arith.constant 0 : i32
    %c0_i32_1 = arith.constant 0 : i32
    return %c0_i32, %c0_i32_0 : i32, i32
  }
  func.func @transform_4(%arg0: i32) -> (i32, i32) {
    %c0_i32 = arith.constant 0 : i32
    %c0_i32_0 = arith.constant 0 : i32
    %c0_i32_1 = arith.constant 0 : i32
    return %c0_i32, %c0_i32_0 : i32, i32
  }
  func.func @transform_5(%arg0: i32) -> (i32, i32) {
    %c0_i32 = arith.constant 0 : i32
    %c0_i32_0 = arith.constant 0 : i32
    %c0_i32_1 = arith.constant 0 : i32
    return %c0_i32, %c0_i32_0 : i32, i32
  }
  func.func @transform_6(%arg0: i32) -> (i32, i32) {
    %c0_i32 = arith.constant 0 : i32
    %c0_i32_0 = arith.constant 0 : i32
    %c0_i32_1 = arith.constant 0 : i32
    return %c0_i32, %c0_i32_0 : i32, i32
  }
  func.func @transform_7(%arg0: i32) -> (i32, i32) {
    %c0_i32 = arith.constant 0 : i32
    %c0_i32_0 = arith.constant 0 : i32
    %c0_i32_1 = arith.constant 0 : i32
    return %c0_i32, %c0_i32_0 : i32, i32
  }
  func.func @transform_8(%arg0: i32) -> (i32, i32) {
    %c0_i32 = arith.constant 0 : i32
    %c0_i32_0 = arith.constant 0 : i32
    %c0_i32_1 = arith.constant 0 : i32
    return %c0_i32, %c0_i32_0 : i32, i32
  }
  func.func @transform_9(%arg0: i32) -> (i32, i32) {
    %c0_i32 = arith.constant 0 : i32
    %c0_i32_0 = arith.constant 0 : i32
    return %arg0, %c0_i32 : i32, i32
  }
}

</mosaic_0001>

<llo_original>
// kernel: classifier_forward.1
$region0: #{classifier_forward.1}
  #allocation0 [shape = 'u32[]', space=smem, size = 0x4, offset = 0x4, fixed_abs, tag = 'smem constant byte address 0x4 - core index']
  #allocation1 [shape = 'u32[144,128]{1,0:T(1,128)}', space=vmem, size = 0x12000, scoped, tag = 'internal scratch']
  %s0 = inlined_call_operand.vmem [shape: bf16[8,32], index: 0, kind: input, shape index: {}]
  %s1 = inlined_call_operand.vmem [shape: bf16[8,32], index: 1, kind: input, shape index: {}]
  %s2 = inlined_call_operand.vmem [shape: bf16[32,64], index: 2, kind: input, shape index: {}]
  %s3 = inlined_call_operand.vmem [shape: bf16[32,64], index: 3, kind: input, shape index: {}]
  %s4 = inlined_call_operand.vmem [shape: f32[1,64], index: 4, kind: input, shape index: {}]
  %s5 = inlined_call_operand.vmem [shape: bf16[64,32], index: 5, kind: input, shape index: {}]
  %s6 = inlined_call_operand.vmem [shape: f32[1,32], index: 6, kind: input, shape index: {}]
  %s7 = inlined_call_operand.vmem [shape: bf16[32,128], index: 7, kind: input, shape index: {}]
  %s8 = inlined_call_operand.vmem [shape: f32[1,128], index: 8, kind: input, shape index: {}]
  %s9 = inlined_call_operand.hbm [shape: f32[8,128], index: 9, kind: output, shape index: {}]
  %s10 = sld [smem:[#allocation0]]
  $region46: #{classifier_forward.1} parent=0
    _
  %s12 = ssub.s32 1, %s10
  %s13 = scalar_select 0, %s12, %s10
  $region1: #{classifier_forward.1} parent=0
    #allocation2 [shape = 'u8[4096]{0}', space=vmem, size = 0x1000, scoped, tag = 'output window, operand 0, single buffered']
    #allocation3 [shape = 's32[1]{0}', space=sflag, size = 0x4, scoped, tag = 'scoped memory for classifier_forward.1']
    %14 = vsyncpa [#allocation3], 0
    // Predicated region
    $region2: #{classifier_forward.1} parent=1 // pred_check
      _
    $region3: #{classifier_forward.1} parent=1 // pred_check_branch
      %16 = sbr.rel (0) target = $region5
    $region4: #{classifier_forward.1} parent=1 // pred_region
      _
    $region5: #{classifier_forward.1} parent=1 // pred_fallthru
      _
    // Predicated region
    $region6: #{classifier_forward.1} parent=1 // pred_check
      _
    $region7: #{classifier_forward.1} parent=1 // pred_check_branch
      %18 = sbr.rel (0) target = $region9
    $region8: #{classifier_forward.1} parent=1 // pred_region
      _
    $region9: #{classifier_forward.1} parent=1 // pred_fallthru
      _
    // Predicated region
    $region10: #{classifier_forward.1} parent=1 // pred_check
      _
    $region11: #{classifier_forward.1} parent=1 // pred_check_branch
      %20 = sbr.rel (0) target = $region13
    $region12: #{classifier_forward.1} parent=1 // pred_region
      _
    $region13: #{classifier_forward.1} parent=1 // pred_fallthru
      _
    // Predicated region
    $region14: #{classifier_forward.1} parent=1 // pred_check
      _
    $region15: #{classifier_forward.1} parent=1 // pred_check_branch
      %22 = sbr.rel (0) target = $region17
    $region16: #{classifier_forward.1} parent=1 // pred_region
      _
    $region17: #{classifier_forward.1} parent=1 // pred_fallthru
      _
    // Predicated region
    $region18: #{classifier_forward.1} parent=1 // pred_check
      _
    $region19: #{classifier_forward.1} parent=1 // pred_check_branch
      %24 = sbr.rel (0) target = $region21
    $region20: #{classifier_forward.1} parent=1 // pred_region
      _
    $region21: #{classifier_forward.1} parent=1 // pred_fallthru
      _
    // Predicated region
    $region22: #{classifier_forward.1} parent=1 // pred_check
      _
    $region23: #{classifier_forward.1} parent=1 // pred_check_branch
      %26 = sbr.rel (0) target = $region25
    $region24: #{classifier_forward.1} parent=1 // pred_region
      _
    $region25: #{classifier_forward.1} parent=1 // pred_fallthru
      _
    // Predicated region
    $region26: #{classifier_forward.1} parent=1 // pred_check
      _
    $region27: #{classifier_forward.1} parent=1 // pred_check_branch
      %28 = sbr.rel (0) target = $region29
    $region28: #{classifier_forward.1} parent=1 // pred_region
      _
    $region29: #{classifier_forward.1} parent=1 // pred_fallthru
      _
    // Predicated region
    $region30: #{classifier_forward.1} parent=1 // pred_check
      _
    $region31: #{classifier_forward.1} parent=1 // pred_check_branch
      %30 = sbr.rel (0) target = $region33
    $region32: #{classifier_forward.1} parent=1 // pred_region
      _
    $region33: #{classifier_forward.1} parent=1 // pred_fallthru
      _
    // Predicated region
    $region34: #{classifier_forward.1} parent=1 // pred_check
      _
    $region35: #{classifier_forward.1} parent=1 // pred_check_branch
      %32 = sbr.rel (0) target = $region37
    $region36: #{classifier_forward.1} parent=1 // pred_region
      _
    $region37: #{classifier_forward.1} parent=1 // pred_fallthru
      _
    %v34 = vld [vmem:[%s0] sm:$0xf]
    %v35 = vld [vmem:[%s2] sm:$0xf]
    %v36 = vld [vmem:[%s2 + $0x4] sm:$0xf]
    %v37 = vld [vmem:[%s2 + $0x8] sm:$0xf]
    %v38 = vld [vmem:[%s2 + $0xc] sm:$0xf]
    %v39 = vld [vmem:[%s1] sm:$0xf]
    %v40 = vld [vmem:[%s3] sm:$0xf]
    %v41 = vld [vmem:[%s3 + $0x4] sm:$0xf]
    %v42 = vld [vmem:[%s3 + $0x8] sm:$0xf]
    %v43 = vld [vmem:[%s3 + $0xc] sm:$0xf]
    %v48 = vunpack.c.l.b16 %v40
    %v49 = vunpack.c.l.b16 %v41
    %v50 = vunpack.c.l.b16 %v42
    %v51 = vunpack.c.l.b16 %v43
    %v52 = vpack.c.b16 %v49, %v48
    %v53 = vpack.c.b16 %v51, %v50
    %vm56 = vcmask 261120
    %v58 = vsel %vm56, %v39, 0
    %60 = vmatprep.subr.bf16.mxu0 0
    %61 = vmatpush1.bf16.msra.mxu0 0
    %62 = vmatprep.subr.bf16.mxu0 0
    %63 = vmatpush1.bf16.msra.mxu0 0
    %64 = vmatprep.subr.bf16.mxu0 0
    %65 = vmatpush1.bf16.msra.mxu0 0
    %66 = vmatprep.subr.bf16.mxu0 0
    %67 = vmatpush1.bf16.msra.mxu0 0
    %68 = vmatprep.subr.bf16.mxu0 0
    %69 = vmatpush1.bf16.msra.mxu0 0
    %70 = vmatprep.subr.bf16.mxu0 0
    %71 = vmatpush1.bf16.msra.mxu0 0
    %72 = vmatprep.subr.bf16.mxu0 0
    %73 = vmatpush1.bf16.msra.mxu0 %v53
    %74 = vmatprep.subr.bf16.mxu0 0
    %75 = vmatpush1.bf16.msra.mxu0 %v52
    %76 = vmatprep.subr.bf16.mxu0 0
    %77 = vmatpush2.bf16.msra.mxu0 0
    %78 = vmatprep.subr.bf16.mxu0 0
    %79 = vmatpush2.bf16.msra.mxu0 0
    %80 = vmatprep.subr.bf16.mxu0 0
    %81 = vmatpush2.bf16.msra.mxu0 0
    %82 = vmatprep.subr.bf16.mxu0 0
    %83 = vmatpush2.bf16.msra.mxu0 0
    %84 = vmatprep.subr.bf16.mxu0 0
    %85 = vmatpush2.bf16.msra.mxu0 0
    %86 = vmatprep.subr.bf16.mxu0 0
    %87 = vmatpush2.bf16.msra.mxu0 0
    %88 = vmatprep.subr.bf16.mxu0 0
    %89 = vmatpush2.bf16.msra.mxu0 0
    %90 = vmatprep.subr.bf16.mxu0 0
    %91 = vmatpush2.bf16.msra.mxu0 0
    %92 = vmatprep.mubr.bf16.mxu0 0
    %93 = vmatmul.mubr.bf16.gmra.mxu0 %v58
    %v94 = vpop.f32.mrf.mxu0
    %v95 = vadd.f32 0.0, %v94
    %v96 = vpop.f32.mrf.mxu0
    %v97 = vpop.f32.mrf.mxu0
    %v98 = vpop.f32.mrf.mxu0
    %99 = vdwg.mxu0
    %v104 = vunpack.c.l.b16 %v35
    %v105 = vunpack.c.l.b16 %v36
    %v106 = vunpack.c.l.b16 %v37
    %v107 = vunpack.c.l.b16 %v38
    %v108 = vpack.c.b16 %v105, %v104
    %v109 = vpack.c.b16 %v107, %v106
    %v113 = vsel %vm56, %v34, 0
    %115 = vmatprep.subr.bf16.mxu0 0
    %116 = vmatpush1.bf16.msra.mxu0 0
    %117 = vmatprep.subr.bf16.mxu0 0
    %118 = vmatpush1.bf16.msra.mxu0 0
    %119 = vmatprep.subr.bf16.mxu0 0
    %120 = vmatpush1.bf16.msra.mxu0 0
    %121 = vmatprep.subr.bf16.mxu0 0
    %122 = vmatpush1.bf16.msra.mxu0 0
    %123 = vmatprep.subr.bf16.mxu0 0
    %124 = vmatpush1.bf16.msra.mxu0 0
    %125 = vmatprep.subr.bf16.mxu0 0
    %126 = vmatpush1.bf16.msra.mxu0 0
    %127 = vmatprep.subr.bf16.mxu0 0
    %128 = vmatpush1.bf16.msra.mxu0 %v109
    %129 = vmatprep.subr.bf16.mxu0 0
    %130 = vmatpush1.bf16.msra.mxu0 %v108
    %131 = vmatprep.subr.bf16.mxu0 0
    %132 = vmatpush2.bf16.msra.mxu0 0
    %133 = vmatprep.subr.bf16.mxu0 0
    %134 = vmatpush2.bf16.msra.mxu0 0
    %135 = vmatprep.subr.bf16.mxu0 0
    %136 = vmatpush2.bf16.msra.mxu0 0
    %137 = vmatprep.subr.bf16.mxu0 0
    %138 = vmatpush2.bf16.msra.mxu0 0
    %139 = vmatprep.subr.bf16.mxu0 0
    %140 = vmatpush2.bf16.msra.mxu0 0
    %141 = vmatprep.subr.bf16.mxu0 0
    %142 = vmatpush2.bf16.msra.mxu0 0
    %143 = vmatprep.subr.bf16.mxu0 0
    %144 = vmatpush2.bf16.msra.mxu0 0
    %145 = vmatprep.subr.bf16.mxu0 0
    %146 = vmatpush2.bf16.msra.mxu0 0
    %147 = vmatprep.mubr.bf16.mxu0 0
    %148 = vmatmul.mubr.bf16.gmra.mxu0 %v113
    %v149 = vpop.f32.mrf.mxu0
    %v150 = vadd.f32 %v95, %v149
    %v151 = vpop.f32.mrf.mxu0
    %v152 = vpop.f32.mrf.mxu0
    %v153 = vpop.f32.mrf.mxu0
    %154 = vdwg.mxu0
    %v155 = vld [vmem:[%s4] sm:$0x1]
    %v157 = vlaneseq
    %v158 = vshrl.u32 %v157, 7
    %v159 = vsub.s32 0, %v158
    %v160 = vrot.slane %v155, %v159
    %v162 = vadd.f32 %v150, %v160
    %v163 = vmax.f32 %v162, 0.0
    %v164 = vpack.c.bf16 %v163, %v163
    %v165 = vld [vmem:[%s5] sm:$0xf]
    %v166 = vld [vmem:[%s5 + $0x4] sm:$0xf]
    %v167 = vld [vmem:[%s5 + $0x8] sm:$0xf]
    %v168 = vld [vmem:[%s5 + $0xc] sm:$0xf]
    %v169 = vld [vmem:[%s5 + $0x10] sm:$0xf]
    %v170 = vld [vmem:[%s5 + $0x14] sm:$0xf]
    %v171 = vld [vmem:[%s5 + $0x18] sm:$0xf]
    %v172 = vld [vmem:[%s5 + $0x1c] sm:$0xf]
    %v173 = vld [vmem:[%s6] sm:$0x1]
    %v175 = vlaneseq
    %v176 = vshrl.u32 %v175, 7
    %v177 = vsub.s32 0, %v176
    %v178 = vrot.slane %v173, %v177
    %v188 = vunpack.c.l.b16 %v165
    %v189 = vunpack.c.l.b16 %v166
    %v190 = vunpack.c.l.b16 %v167
    %v191 = vunpack.c.l.b16 %v168
    %v192 = vunpack.c.l.b16 %v169
    %v193 = vunpack.c.l.b16 %v170
    %v194 = vunpack.c.l.b16 %v171
    %v195 = vunpack.c.l.b16 %v172
    %v196 = vpack.c.b16 %v189, %v188
    %v197 = vpack.c.b16 %v191, %v190
    %v198 = vpack.c.b16 %v193, %v192
    %v199 = vpack.c.b16 %v195, %v194
    %vm204 = vcmask 523264
    %v206 = vsel %vm204, %v164, 0
    %208 = vmatprep.subr.bf16.mxu0 0
    %209 = vmatpush1.bf16.msra.mxu0 0
    %210 = vmatprep.subr.bf16.mxu0 0
    %211 = vmatpush1.bf16.msra.mxu0 0
    %212 = vmatprep.subr.bf16.mxu0 0
    %213 = vmatpush1.bf16.msra.mxu0 0
    %214 = vmatprep.subr.bf16.mxu0 0
    %215 = vmatpush1.bf16.msra.mxu0 0
    %216 = vmatprep.subr.bf16.mxu0 0
    %217 = vmatpush1.bf16.msra.mxu0 %v199
    %218 = vmatprep.subr.bf16.mxu0 0
    %219 = vmatpush1.bf16.msra.mxu0 %v198
    %220 = vmatprep.subr.bf16.mxu0 0
    %221 = vmatpush1.bf16.msra.mxu0 %v197
    %222 = vmatprep.subr.bf16.mxu0 0
    %223 = vmatpush1.bf16.msra.mxu0 %v196
    %224 = vmatprep.subr.bf16.mxu0 0
    %225 = vmatpush2.bf16.msra.mxu0 0
    %226 = vmatprep.subr.bf16.mxu0 0
    %227 = vmatpush2.bf16.msra.mxu0 0
    %228 = vmatprep.subr.bf16.mxu0 0
    %229 = vmatpush2.bf16.msra.mxu0 0
    %230 = vmatprep.subr.bf16.mxu0 0
    %231 = vmatpush2.bf16.msra.mxu0 0
    %232 = vmatprep.subr.bf16.mxu0 0
    %233 = vmatpush2.bf16.msra.mxu0 0
    %234 = vmatprep.subr.bf16.mxu0 0
    %235 = vmatpush2.bf16.msra.mxu0 0
    %236 = vmatprep.subr.bf16.mxu0 0
    %237 = vmatpush2.bf16.msra.mxu0 0
    %238 = vmatprep.subr.bf16.mxu0 0
    %239 = vmatpush2.bf16.msra.mxu0 0
    %240 = vmatprep.mubr.bf16.mxu0 0
    %241 = vmatmul.mubr.bf16.gmra.mxu0 %v206
    %v242 = vpop.f32.mrf.mxu0
    %v243 = vadd.f32 %v178, %v242
    %v244 = vpop.f32.mrf.mxu0
    %v245 = vpop.f32.mrf.mxu0
    %v246 = vpop.f32.mrf.mxu0
    %247 = vdwg.mxu0
    %v248 = vmax.f32 %v243, 0.0
    %v249 = vpack.c.bf16 %v248, %v248
    %v250 = vld [vmem:[%s7] sm:$0xf]
    %v251 = vld [vmem:[%s7 + $0x4] sm:$0xf]
    %v252 = vld [vmem:[%s7 + $0x8] sm:$0xf]
    %v253 = vld [vmem:[%s7 + $0xc] sm:$0xf]
    %v254 = vld [vmem:[%s8] sm:$0x1]
    %v256 = vlaneseq
    %v257 = vshrl.u32 %v256, 7
    %v258 = vsub.s32 0, %v257
    %v259 = vrot.slane %v254, %v258
    %v265 = vunpack.c.l.b16 %v250
    %v266 = vunpack.c.l.b16 %v251
    %v267 = vunpack.c.l.b16 %v252
    %v268 = vunpack.c.l.b16 %v253
    %v269 = vpack.c.b16 %v266, %v265
    %v270 = vpack.c.b16 %v268, %v267
    %v274 = vsel %vm56, %v249, 0
    %276 = vmatprep.subr.bf16.mxu0 0
    %277 = vmatpush1.bf16.msra.mxu0 0
    %278 = vmatprep.subr.bf16.mxu0 0
    %279 = vmatpush1.bf16.msra.mxu0 0
    %280 = vmatprep.subr.bf16.mxu0 0
    %281 = vmatpush1.bf16.msra.mxu0 0
    %282 = vmatprep.subr.bf16.mxu0 0
    %283 = vmatpush1.bf16.msra.mxu0 0
    %284 = vmatprep.subr.bf16.mxu0 0
    %285 = vmatpush1.bf16.msra.mxu0 0
    %286 = vmatprep.subr.bf16.mxu0 0
    %287 = vmatpush1.bf16.msra.mxu0 0
    %288 = vmatprep.subr.bf16.mxu0 0
    %289 = vmatpush1.bf16.msra.mxu0 %v270
    %290 = vmatprep.subr.bf16.mxu0 0
    %291 = vmatpush1.bf16.msra.mxu0 %v269
    %292 = vmatprep.subr.bf16.mxu0 0
    %293 = vmatpush2.bf16.msra.mxu0 0
    %294 = vmatprep.subr.bf16.mxu0 0
    %295 = vmatpush2.bf16.msra.mxu0 0
    %296 = vmatprep.subr.bf16.mxu0 0
    %297 = vmatpush2.bf16.msra.mxu0 0
    %298 = vmatprep.subr.bf16.mxu0 0
    %299 = vmatpush2.bf16.msra.mxu0 0
    %300 = vmatprep.subr.bf16.mxu0 0
    %301 = vmatpush2.bf16.msra.mxu0 0
    %302 = vmatprep.subr.bf16.mxu0 0
    %303 = vmatpush2.bf16.msra.mxu0 0
    %304 = vmatprep.subr.bf16.mxu0 0
    %305 = vmatpush2.bf16.msra.mxu0 0
    %306 = vmatprep.subr.bf16.mxu0 0
    %307 = vmatpush2.bf16.msra.mxu0 0
    %308 = vmatprep.mubr.bf16.mxu0 0
    %309 = vmatmul.mubr.bf16.gmra.mxu0 %v274
    %v310 = vpop.f32.mrf.mxu0
    %v311 = vadd.f32 %v259, %v310
    %v312 = vpop.f32.mrf.mxu0
    %v313 = vpop.f32.mrf.mxu0
    %v314 = vpop.f32.mrf.mxu0
    %315 = vdwg.mxu0
    %316 = vst [vmem:[#allocation2] sm:$0xff] %v311
    // Predicated region
    $region38: #{classifier_forward.1} parent=1 // pred_check
      _
    $region39: #{classifier_forward.1} parent=1 // pred_check_branch
      %318 = sbr.rel (0) target = $region41
    $region40: #{classifier_forward.1} parent=1 // pred_region
      %s320 = ssub.s32 128, 128
      %321 = vsyncadd [#allocation3], %s320
      %s323 = sshll.u32 [#allocation2], 4
      %s324 = int_to_ptr.vmem [resolvable:$true] %s323
      %326 = dma.vmem_to_hbm [thread:$0]  %s324, 128, %s9, [#allocation3]
    $region41: #{classifier_forward.1} parent=1 // pred_fallthru
      _
    // Predicated region
    $region42: #{classifier_forward.1} parent=1 // pred_check
      _
    $region43: #{classifier_forward.1} parent=1 // pred_check_branch
      %328 = sbr.rel (0) target = $region45
    $region44: #{classifier_forward.1} parent=1 // pred_region
      %329 = dma.done [#allocation3], 128
    $region45: #{classifier_forward.1} parent=1 // pred_fallthru
      _
    %330 = vsyncpa [#allocation3], 1

</llo_original>
